<compile_context>
chip_gen: v5e
topology: v5e:2x2
jax: 0.10.0
libtpu: 0.0.40
codegen_flags: <defaults>
</compile_context>

<pallas_src>
import functools

import jax
import jax.numpy as jnp
import numpy as np
from jax.experimental import pallas as pl
from jax.experimental.pallas import tpu as pltpu

C_OUT = 16              # conv out channels
KH = 4                  # conv kernel height == number of DNA bases
KW = 24                 # conv kernel width
K_IM2COL = KH * KW      # 96
PAD_L, PAD_R = 11, 12
H1 = 32                 # hidden units of first Linear
TARGET_LANES = 4096     # lanes per grid step (>=512 for HBM roofline, VMEM-safe)


def deepbind_kernel(x_ref, wcb_ref, hp_ref, o_ref, *, b_blk, l_pad):
    """One grid step: b_blk sequences, all layers fused, channel-major layout."""
    x = x_ref[...]                          # (96, b_blk*l_pad) f32, lane-dense
    wcb = wcb_ref[...]                      # (16, 99) = [conv W | bias | bn_scale | bn_shift]
    hp = hp_ref[...]                        # (32, 19) = [W1^T | b1 | w2 | b2]

    wc = wcb[:, :K_IM2COL]                  # (16, 96)
    bc = wcb[:, K_IM2COL:K_IM2COL + 1]      # (16, 1)
    scale = wcb[:, K_IM2COL + 1:K_IM2COL + 2]
    shift = wcb[:, K_IM2COL + 2:K_IM2COL + 3]

    # Conv as a single K=96 MXU contraction, then fused bias+ReLU+BN on the VPU.
    conv = jnp.dot(wc, x, preferred_element_type=jnp.float32)       # (16, b_blk*l_pad)
    act = jnp.maximum(conv + bc, 0.0) * scale + shift

    # Global max pool over each length-l_pad lane segment (one per sequence).
    # Static 128-aligned slices + lane reductions; padded columns replicate
    # valid data so they never change the max.
    cols = []
    for j in range(b_blk):
        seg = act[:, j * l_pad:(j + 1) * l_pad]                     # (16, l_pad)
        cols.append(jnp.max(seg, axis=1, keepdims=True))            # (16, 1)
    pooled = cols[0] if b_blk == 1 else jnp.concatenate(cols, axis=1)   # (16, b_blk)

    # Dense head, kept channel-major (batch stays on the lane axis, no transposes).
    w1t = hp[:, :C_OUT]                     # (32, 16)
    b1 = hp[:, C_OUT:C_OUT + 1]             # (32, 1)
    w2c = hp[:, C_OUT + 1:C_OUT + 2]        # (32, 1)
    b2 = hp[0:1, C_OUT + 2:C_OUT + 3]       # (1, 1)

    h = jnp.maximum(jnp.dot(w1t, pooled, preferred_element_type=jnp.float32) + b1, 0.0)
    z = jnp.sum(w2c * h, axis=0, keepdims=True) + b2                # (1, b_blk)
    o_ref[...] = jax.nn.sigmoid(z)


def _round_up(x, m):
    return ((x + m - 1) // m) * m


def deepbind_forward(x, params):
    """x: (B, 4, L) float32 one-hot DNA.  Returns sigmoid probabilities (B, 1)."""
    B, _, L = x.shape
    x = x.astype(jnp.float32)

    # --- wrapper glue (plain JAX, trace-time): pad + im2col unfold ----------
    x_pad = jnp.pad(x, ((0, 0), (0, 0), (PAD_L, PAD_R)))                    # (B, 4, L+23)
    patches = jnp.stack([x_pad[:, :, w:w + L] for w in range(KW)], axis=2)  # (B, 4, 24, L)
    patches = patches.reshape(B, K_IM2COL, L)                               # (B, 96, L)

    l_pad = _round_up(max(L, 1), 128)
    b_blk = max(1, min(B, TARGET_LANES // l_pad))
    b_pad = _round_up(B, b_blk)
    num_blocks = b_pad // b_blk
    nb = b_blk * l_pad

    # Edge-pad: duplicated columns never change a max; padded batch rows are
    # sliced off after the call.
    patches = jnp.pad(patches, ((0, b_pad - B), (0, 0), (0, l_pad - L)), mode="edge")
    flat = patches.transpose(1, 0, 2).reshape(K_IM2COL, b_pad * l_pad)      # (96, b_pad*l_pad)

    # Fold eval-mode BatchNorm into a per-channel affine and pack parameters
    # (3 kernel inputs total instead of 9 separate tiny DMAs).
    eps = 1e-5
    scale = params["bn_gamma"] / jnp.sqrt(params["bn_var"] + eps)
    shift = params["bn_beta"] - params["bn_mean"] * scale
    wcb = jnp.concatenate(
        [params["wc"].reshape(C_OUT, K_IM2COL).astype(jnp.float32),
         params["bc"][:, None], scale[:, None], shift[:, None]], axis=1)    # (16, 99)

    hp = jnp.zeros((H1, C_OUT + 3), jnp.float32)                            # (32, 19)
    hp = hp.at[:, :C_OUT].set(params["w1"].T)                               # W1^T (32,16)
    hp = hp.at[:, C_OUT].set(params["b1"])                                  # b1   (32,)
    hp = hp.at[:, C_OUT + 1].set(params["w2"][:, 0])                        # w2   (32,)
    hp = hp.at[0, C_OUT + 2].set(params["b2"][0])                           # b2

    kernel = functools.partial(deepbind_kernel, b_blk=b_blk, l_pad=l_pad)
    out = pl.pallas_call(
        kernel,
        out_shape=jax.ShapeDtypeStruct((num_blocks, b_blk), jnp.float32),
        grid=(num_blocks,),
        in_specs=[
            pl.BlockSpec((K_IM2COL, nb), lambda i: (0, i)),                 # patch tile (lane-dense)
            pl.BlockSpec((C_OUT, K_IM2COL + 3), lambda i: (0, 0)),          # packed conv/BN params
            pl.BlockSpec((H1, C_OUT + 3), lambda i: (0, 0)),                # packed head params
        ],
        out_specs=pl.BlockSpec((1, b_blk), lambda i: (i, 0)),
        compiler_params=pltpu.CompilerParams(
            dimension_semantics=("parallel",)),                             # 2 TCs on v7x
    )(flat, wcb, hp)

    return out.reshape(b_pad, 1)[:B]


def deepbind_ref(x, params):
    """Plain-JAX reference (independent conv lowering) for verification."""
    eps = 1e-5
    xp = jnp.pad(x.astype(jnp.float32), ((0, 0), (0, 0), (PAD_L, PAD_R)))
    xp = xp[:, None, :, :]                                   # NCHW (B,1,4,Lp)
    w = params["wc"][:, None, :, :]                          # OIHW (16,1,4,24)
    y = jax.lax.conv_general_dilated(
        xp, w, window_strides=(1, 1), padding="VALID",
        dimension_numbers=("NCHW", "OIHW", "NCHW"))          # (B,16,1,L)
    y = y + params["bc"].reshape(1, C_OUT, 1, 1)
    y = jnp.maximum(y, 0.0)
    scale = params["bn_gamma"] / jnp.sqrt(params["bn_var"] + eps)
    shift = params["bn_beta"] - params["bn_mean"] * scale
    y = y * scale.reshape(1, C_OUT, 1, 1) + shift.reshape(1, C_OUT, 1, 1)
    feat = jnp.max(y, axis=(2, 3))                           # (B,16)
    h = jnp.maximum(feat @ params["w1"] + params["b1"], 0.0)
    return jax.nn.sigmoid(h @ params["w2"] + params["b2"])   # (B,1)


def init_params(key):
    ks = jax.random.split(key, 10)
    return {
        # Conv2d(1, 16, (4, 24)) weight (out,in=1,kh,kw) stored without the in dim.
        "wc": jax.random.normal(ks[0], (C_OUT, KH, KW), jnp.float32) * 0.1,
        "bc": jax.random.normal(ks[1], (C_OUT,), jnp.float32) * 0.1,
        # BatchNorm2d(16): affine params + running stats (deterministic, nontrivial).
        "bn_gamma": 1.0 + 0.1 * jax.random.normal(ks[2], (C_OUT,), jnp.float32),
        "bn_beta": 0.1 * jax.random.normal(ks[3], (C_OUT,), jnp.float32),
        "bn_mean": 0.05 * jax.random.normal(ks[4], (C_OUT,), jnp.float32),
        "bn_var": 1.0 + 0.2 * jax.random.uniform(ks[5], (C_OUT,), jnp.float32),
        # Linear(16,32) / Linear(32,1), stored as (in, out).
        "w1": jax.random.normal(ks[6], (C_OUT, H1), jnp.float32) * 0.2,
        "b1": jax.random.normal(ks[7], (H1,), jnp.float32) * 0.1,
        "w2": jax.random.normal(ks[8], (H1, 1), jnp.float32) * 0.2,
        "b2": jax.random.normal(ks[9], (1,), jnp.float32) * 0.1,
    }


if __name__ == "__main__":
    key = jax.random.PRNGKey(0)
    kx, kp, kl = jax.random.split(key, 3)

    B, L = 2, 16
    # One-hot DNA-style input: (B, 4, L).
    bases = jax.random.randint(kx, (B, L), 0, 4)
    x = jax.nn.one_hot(bases, 4, dtype=jnp.float32).transpose(0, 2, 1)  # (B,4,L)
    params = init_params(kp)

    logits = jax.block_until_ready(deepbind_forward(x, params))
    ref = jax.block_until_ready(deepbind_ref(x, params))
    np.testing.assert_allclose(np.asarray(logits), np.asarray(ref),
                               rtol=1e-5, atol=1e-5)

    # Optional loss path (BCELoss) in plain JAX, matching the PyTorch branch.
    labels = jax.random.bernoulli(kl, 0.5, (B,)).astype(jnp.float32).reshape(-1, 1)
    eps = 1e-7
    p_clip = jnp.clip(logits, eps, 1.0 - eps)
    loss = -jnp.mean(labels * jnp.log(p_clip) + (1.0 - labels) * jnp.log(1.0 - p_clip))
    jax.block_until_ready(loss)

    print("KERNEL_OK")
</pallas_src>

<mosaic_0001>
module attributes {stable_mosaic.version = 11 : i64} {
  func.func @deepbind_kernel(%arg0: i32, %arg1: memref<96x256xf32, #tpu.memory_space<vmem>>, %arg2: memref<16x99xf32, #tpu.memory_space<vmem>>, %arg3: memref<32x19xf32, #tpu.memory_space<vmem>>, %arg4: memref<1x2xf32, #tpu.memory_space<vmem>>) attributes {dimension_semantics = [#tpu.dimension_semantics<parallel>], iteration_bounds = array<i64: 1>, scalar_prefetch = 0 : i64, scratch_operands = 0 : i64, tpu.core_type = #tpu.core_type<tc>, window_params = [{transform_indices = @transform_0, window_bounds = array<i64: 96, 256>}, {pipeline_mode = #tpu.pipeline_mode<synchronous>, transform_indices = @transform_1, window_bounds = array<i64: 16, 99>}, {pipeline_mode = #tpu.pipeline_mode<synchronous>, transform_indices = @transform_2, window_bounds = array<i64: 32, 19>}, {transform_indices = @transform_3, window_bounds = array<i64: 1, 2>}]} {
    %c0 = arith.constant 0 : index
    %c0_0 = arith.constant 0 : index
    %0 = vector.load %arg1[%c0, %c0_0] : memref<96x256xf32, #tpu.memory_space<vmem>>, vector<96x256xf32>
    %c0_1 = arith.constant 0 : index
    %c0_2 = arith.constant 0 : index
    %1 = vector.load %arg2[%c0_1, %c0_2] : memref<16x99xf32, #tpu.memory_space<vmem>>, vector<16x99xf32>
    %c0_3 = arith.constant 0 : index
    %c0_4 = arith.constant 0 : index
    %2 = vector.load %arg3[%c0_3, %c0_4] : memref<32x19xf32, #tpu.memory_space<vmem>>, vector<32x19xf32>
    %3 = vector.extract_strided_slice %1 {offsets = [0, 0], sizes = [16, 96], strides = [1, 1]} : vector<16x99xf32> to vector<16x96xf32>
    %4 = vector.extract_strided_slice %1 {offsets = [0, 96], sizes = [16, 1], strides = [1, 1]} : vector<16x99xf32> to vector<16x1xf32>
    %5 = vector.extract_strided_slice %1 {offsets = [0, 97], sizes = [16, 1], strides = [1, 1]} : vector<16x99xf32> to vector<16x1xf32>
    %6 = vector.extract_strided_slice %1 {offsets = [0, 98], sizes = [16, 1], strides = [1, 1]} : vector<16x99xf32> to vector<16x1xf32>
    %cst = arith.constant dense<0.000000e+00> : vector<16x256xf32>
    %7 = tpu.matmul %3, %0, %cst {dimension_numbers = #tpu.dot_dimension_numbers<[1], [0], [0], [1], [0, 0, 1, 1], [], []>} : vector<16x96xf32>, vector<96x256xf32>, vector<16x256xf32> -> vector<16x256xf32>
    %8 = vector.broadcast %4 : vector<16x1xf32> to vector<16x256xf32>
    %9 = arith.addf %7, %8 : vector<16x256xf32>
    %cst_5 = arith.constant 0.000000e+00 : f32
    %10 = vector.broadcast %cst_5 : f32 to vector<16x256xf32>
    %11 = arith.maximumf %9, %10 : vector<16x256xf32>
    %12 = vector.broadcast %5 : vector<16x1xf32> to vector<16x256xf32>
    %13 = arith.mulf %11, %12 : vector<16x256xf32>
    %14 = vector.broadcast %6 : vector<16x1xf32> to vector<16x256xf32>
    %15 = arith.addf %13, %14 : vector<16x256xf32>
    %16 = vector.extract_strided_slice %15 {offsets = [0, 0], sizes = [16, 128], strides = [1, 1]} : vector<16x256xf32> to vector<16x128xf32>
    %cst_6 = arith.constant dense<0xFF800000> : vector<16xf32>
    %17 = vector.multi_reduction <maximumf>, %16, %cst_6 [1] : vector<16x128xf32> to vector<16xf32>
    %18 = vector.shape_cast %17 : vector<16xf32> to vector<16x1xf32>
    %19 = vector.extract_strided_slice %15 {offsets = [0, 128], sizes = [16, 128], strides = [1, 1]} : vector<16x256xf32> to vector<16x128xf32>
    %cst_7 = arith.constant dense<0xFF800000> : vector<16xf32>
    %20 = vector.multi_reduction <maximumf>, %19, %cst_7 [1] : vector<16x128xf32> to vector<16xf32>
    %21 = vector.shape_cast %20 : vector<16xf32> to vector<16x1xf32>
    %22 = tpu.concatenate %18, %21 in 1 : vector<16x1xf32>, vector<16x1xf32> -> vector<16x2xf32>
    %23 = vector.extract_strided_slice %2 {offsets = [0, 0], sizes = [32, 16], strides = [1, 1]} : vector<32x19xf32> to vector<32x16xf32>
    %24 = vector.extract_strided_slice %2 {offsets = [0, 16], sizes = [32, 1], strides = [1, 1]} : vector<32x19xf32> to vector<32x1xf32>
    %25 = vector.extract_strided_slice %2 {offsets = [0, 17], sizes = [32, 1], strides = [1, 1]} : vector<32x19xf32> to vector<32x1xf32>
    %26 = vector.extract_strided_slice %2 {offsets = [0, 18], sizes = [1, 1], strides = [1, 1]} : vector<32x19xf32> to vector<1x1xf32>
    %cst_8 = arith.constant dense<0.000000e+00> : vector<32x2xf32>
    %27 = tpu.matmul %23, %22, %cst_8 {dimension_numbers = #tpu.dot_dimension_numbers<[1], [0], [0], [1], [0, 0, 1, 1], [], []>} : vector<32x16xf32>, vector<16x2xf32>, vector<32x2xf32> -> vector<32x2xf32>
    %28 = vector.broadcast %24 : vector<32x1xf32> to vector<32x2xf32>
    %29 = arith.addf %27, %28 : vector<32x2xf32>
    %cst_9 = arith.constant 0.000000e+00 : f32
    %30 = vector.broadcast %cst_9 : f32 to vector<32x2xf32>
    %31 = arith.maximumf %29, %30 : vector<32x2xf32>
    %32 = vector.broadcast %25 : vector<32x1xf32> to vector<32x2xf32>
    %33 = arith.mulf %32, %31 : vector<32x2xf32>
    %cst_10 = arith.constant dense<0.000000e+00> : vector<2xf32>
    %34 = vector.multi_reduction <add>, %33, %cst_10 [0] : vector<32x2xf32> to vector<2xf32>
    %35 = vector.shape_cast %34 : vector<2xf32> to vector<1x2xf32>
    %36 = vector.broadcast %26 : vector<1x1xf32> to vector<1x2xf32>
    %37 = arith.addf %35, %36 : vector<1x2xf32>
    %38 = arith.negf %37 : vector<1x2xf32>
    %39 = math.exp %38 : vector<1x2xf32>
    %cst_11 = arith.constant 1.000000e+00 : f32
    %40 = vector.broadcast %cst_11 : f32 to vector<1x2xf32>
    %41 = arith.addf %40, %39 : vector<1x2xf32>
    %42 = arith.divf %40, %41 : vector<1x2xf32>
    %c0_12 = arith.constant 0 : index
    %c0_13 = arith.constant 0 : index
    %43 = vector.load %arg4[%c0_12, %c0_13] : memref<1x2xf32, #tpu.memory_space<vmem>>, vector<1x2xf32>
    tpu.vector_store %arg4[%c0_12, %c0_13], %42 {strides = array<i32>} : memref<1x2xf32, #tpu.memory_space<vmem>>, vector<1x2xf32>,
    return
  }
  func.func @transform_0(%arg0: i32) -> (i32, i32) {
    %c0_i32 = arith.constant 0 : i32
    %c0_i32_0 = arith.constant 0 : i32
    return %c0_i32, %arg0 : i32, i32
  }
  func.func @transform_1(%arg0: i32) -> (i32, i32) {
    %c0_i32 = arith.constant 0 : i32
    %c0_i32_0 = arith.constant 0 : i32
    %c0_i32_1 = arith.constant 0 : i32
    return %c0_i32, %c0_i32_0 : i32, i32
  }
  func.func @transform_2(%arg0: i32) -> (i32, i32) {
    %c0_i32 = arith.constant 0 : i32
    %c0_i32_0 = arith.constant 0 : i32
    %c0_i32_1 = arith.constant 0 : i32
    return %c0_i32, %c0_i32_0 : i32, i32
  }
  func.func @transform_3(%arg0: i32) -> (i32, i32) {
    %c0_i32 = arith.constant 0 : i32
    %c0_i32_0 = arith.constant 0 : i32
    return %arg0, %c0_i32 : i32, i32
  }
}

</mosaic_0001>

<llo_original>
// kernel: tpu_custom_call.1
$region0: #{tpu_custom_call.1}
  #allocation0 [shape = 'u32[]', space=smem, size = 0x4, offset = 0x4, fixed_abs, tag = 'smem constant byte address 0x4 - core index']
  #allocation1 [shape = 'u32[72,128]{1,0:T(1,128)}', space=vmem, size = 0x9000, scoped, tag = 'internal scratch']
  %s0 = inlined_call_operand.hbm [shape: f32[96,256], index: 0, kind: input, shape index: {}]
  %s1 = inlined_call_operand.vmem [shape: f32[16,99], index: 1, kind: input, shape index: {}]
  %s2 = inlined_call_operand.vmem [shape: f32[32,19], index: 2, kind: input, shape index: {}]
  %s3 = inlined_call_operand.hbm [shape: f32[1,2], index: 3, kind: output, shape index: {}]
  %s4 = sld [smem:[#allocation0]]
  $region26: #{tpu_custom_call.1} parent=0
    _
  %s6 = ssub.s32 1, %s4
  %s7 = scalar_select 0, %s6, %s4
  $region1: #{tpu_custom_call.1} parent=0
    #allocation2 [shape = 'u8[98304]{0}', space=vmem, size = 0x18000, scoped, tag = 'input window, operand 0, single buffered']
    #allocation3 [shape = 's32[1]{0}', space=sflag, size = 0x4, scoped, tag = 'scoped memory for tpu_custom_call.1']
    #allocation4 [shape = 's32[1]{0}', space=sflag, size = 0x4, scoped, tag = 'scoped memory for tpu_custom_call.1']
    #allocation5 [shape = 'u8[512]{0}', space=vmem, size = 0x400, scoped, tag = 'output window, operand 0, single buffered']
    %8 = vsyncpa [#allocation3], 0
    %9 = vsyncpa [#allocation4], 0
    // Predicated region
    $region2: #{tpu_custom_call.1} parent=1 // pred_check
      _
    $region3: #{tpu_custom_call.1} parent=1 // pred_check_branch
      %11 = sbr.rel (0) target = $region5
    $region4: #{tpu_custom_call.1} parent=1 // pred_region
      %13 = vsyncadd [#allocation3], 0
      %s14 = sshll.u32 %s0, 4
      %s15 = int_to_ptr.hbm [resolvable:$true] %s14
      %s16 = sshll.u32 [#allocation2], 4
      %s17 = int_to_ptr.vmem [resolvable:$true] %s16
      %22 = dma.hbm_to_vmem [thread:$0]  %s15, 3072, %s17, [#allocation3], 256, 256, 16
    $region5: #{tpu_custom_call.1} parent=1 // pred_fallthru
      _
    // Predicated region
    $region6: #{tpu_custom_call.1} parent=1 // pred_check
      _
    $region7: #{tpu_custom_call.1} parent=1 // pred_check_branch
      %24 = sbr.rel (0) target = $region9
    $region8: #{tpu_custom_call.1} parent=1 // pred_region
      _
    $region9: #{tpu_custom_call.1} parent=1 // pred_fallthru
      _
    // Predicated region
    $region10: #{tpu_custom_call.1} parent=1 // pred_check
      _
    $region11: #{tpu_custom_call.1} parent=1 // pred_check_branch
      %26 = sbr.rel (0) target = $region13
    $region12: #{tpu_custom_call.1} parent=1 // pred_region
      _
    $region13: #{tpu_custom_call.1} parent=1 // pred_fallthru
      _
    // Predicated region
    $region14: #{tpu_custom_call.1} parent=1 // pred_check
      _
    $region15: #{tpu_custom_call.1} parent=1 // pred_check_branch
      %28 = sbr.rel (0) target = $region17
    $region16: #{tpu_custom_call.1} parent=1 // pred_region
      %30 = dma.done [#allocation3], 3072
    $region17: #{tpu_custom_call.1} parent=1 // pred_fallthru
      _
    %v31 = vld [vmem:[#allocation2] sm:$0xff]
    %v32 = vld [vmem:[#allocation2 + $0x8] sm:$0xff]
    %v33 = vld [vmem:[#allocation2 + $0x10] sm:$0xff]
    %v34 = vld [vmem:[#allocation2 + $0x18] sm:$0xff]
    %v35 = vld [vmem:[#allocation2 + $0x20] sm:$0xff]
    %v36 = vld [vmem:[#allocation2 + $0x28] sm:$0xff]
    %v37 = vld [vmem:[#allocation2 + $0x30] sm:$0xff]
    %v38 = vld [vmem:[#allocation2 + $0x38] sm:$0xff]
    %v39 = vld [vmem:[#allocation2 + $0x40] sm:$0xff]
    %v40 = vld [vmem:[#allocation2 + $0x48] sm:$0xff]
    %v41 = vld [vmem:[#allocation2 + $0x50] sm:$0xff]
    %v42 = vld [vmem:[#allocation2 + $0x58] sm:$0xff]
    %v43 = vld [vmem:[#allocation2 + $0x60] sm:$0xff]
    %v44 = vld [vmem:[#allocation2 + $0x68] sm:$0xff]
    %v45 = vld [vmem:[#allocation2 + $0x70] sm:$0xff]
    %v46 = vld [vmem:[#allocation2 + $0x78] sm:$0xff]
    %v47 = vld [vmem:[#allocation2 + $0x80] sm:$0xff]
    %v48 = vld [vmem:[#allocation2 + $0x88] sm:$0xff]
    %v49 = vld [vmem:[#allocation2 + $0x90] sm:$0xff]
    %v50 = vld [vmem:[#allocation2 + $0x98] sm:$0xff]
    %v51 = vld [vmem:[#allocation2 + $0xa0] sm:$0xff]
    %v52 = vld [vmem:[#allocation2 + $0xa8] sm:$0xff]
    %v53 = vld [vmem:[#allocation2 + $0xb0] sm:$0xff]
    %v54 = vld [vmem:[#allocation2 + $0xb8] sm:$0xff]
    %v55 = vld [vmem:[%s1] sm:$0xff]
    %v56 = vld [vmem:[%s1 + $0x8] sm:$0xff]
    %v57 = vld [vmem:[%s2] sm:$0xff]
    %v58 = vld [vmem:[%s2 + $0x8] sm:$0xff]
    %v59 = vld [vmem:[%s2 + $0x10] sm:$0xff]
    %v60 = vld [vmem:[%s2 + $0x18] sm:$0xff]
    %62 = vset.pattern.permute.xlu0 96
    %63 = vperm.xlu0 %62, %v55
    %v64 = vpop.permute.xlu0 %63
    %67 = vset.pattern.permute.xlu0 96
    %68 = vperm.xlu0 %67, %v56
    %v69 = vpop.permute.xlu0 %68
    %vm71 = vcmask 785408
    %v72 = vsel %vm71, %v55, 0
    %v74 = vsel %vm71, %v56, 0
    %76 = vmatpush.msra.mxu0 0.0
    %77 = vmatpush.msra.mxu0 0.0
    %78 = vmatpush.msra.mxu0 0.0
    %79 = vmatpush.msra.mxu0 0.0
    %80 = vmatpush.msra.mxu0 %v53
    %81 = vmatpush.msra.mxu0 %v51
    %82 = vmatpush.msra.mxu0 %v49
    %83 = vmatpush.msra.mxu0 %v47
    %84 = vmatpush.msra.mxu0 %v45
    %85 = vmatpush.msra.mxu0 %v43
    %86 = vmatpush.msra.mxu0 %v41
    %87 = vmatpush.msra.mxu0 %v39
    %88 = vmatpush.msra.mxu0 %v37
    %89 = vmatpush.msra.mxu0 %v35
    %90 = vmatpush.msra.mxu0 %v33
    %91 = vmatpush.msra.mxu0 %v31
    %92 = vmatmul.f32.gmra.mxu0 %v72
    %v93 = vpop.f32.mrf.mxu0
    %v94 = vadd.f32 %v64, %v93
    %95 = vmatmul.f32.gmra.mxu0 %v74
    %v96 = vpop.f32.mrf.mxu0
    %v97 = vadd.f32 %v69, %v96
    %98 = vdwg.mxu0
    %99 = vmatpush.msra.mxu0 0.0
    %100 = vmatpush.msra.mxu0 0.0
    %101 = vmatpush.msra.mxu0 0.0
    %102 = vmatpush.msra.mxu0 0.0
    %103 = vmatpush.msra.mxu0 %v54
    %104 = vmatpush.msra.mxu0 %v52
    %105 = vmatpush.msra.mxu0 %v50
    %106 = vmatpush.msra.mxu0 %v48
    %107 = vmatpush.msra.mxu0 %v46
    %108 = vmatpush.msra.mxu0 %v44
    %109 = vmatpush.msra.mxu0 %v42
    %110 = vmatpush.msra.mxu0 %v40
    %111 = vmatpush.msra.mxu0 %v38
    %112 = vmatpush.msra.mxu0 %v36
    %113 = vmatpush.msra.mxu0 %v34
    %114 = vmatpush.msra.mxu0 %v32
    %115 = vmatmul.f32.gmra.mxu0 %v72
    %v116 = vpop.f32.mrf.mxu0
    %v117 = vadd.f32 %v64, %v116
    %118 = vmatmul.f32.gmra.mxu0 %v74
    %v119 = vpop.f32.mrf.mxu0
    %v120 = vadd.f32 %v69, %v119
    %121 = vdwg.mxu0
    %v122 = vmax.f32 %v94, 0.0
    %v123 = vmax.f32 %v117, 0.0
    %v124 = vmax.f32 %v97, 0.0
    %v125 = vmax.f32 %v120, 0.0
    %126 = vset.pattern.permute.xlu0 97
    %127 = vperm.xlu0 %126, %v55
    %v128 = vpop.permute.xlu0 %127
    %130 = vset.pattern.permute.xlu0 97
    %131 = vperm.xlu0 %130, %v56
    %v132 = vpop.permute.xlu0 %131
    %v134 = vmul.f32 %v122, %v128
    %v135 = vmul.f32 %v123, %v128
    %v136 = vmul.f32 %v124, %v132
    %v137 = vmul.f32 %v125, %v132
    %138 = vset.pattern.permute.xlu0 98
    %139 = vperm.xlu0 %138, %v55
    %v140 = vpop.permute.xlu0 %139
    %142 = vset.pattern.permute.xlu0 98
    %143 = vperm.xlu0 %142, %v56
    %v144 = vpop.permute.xlu0 %143
    %v146 = vadd.f32 %v134, %v140
    %v147 = vadd.f32 %v135, %v140
    %v148 = vadd.f32 %v136, %v144
    %v149 = vadd.f32 %v137, %v144
    %150 = vmax.xlane.f32.xlu0 %v146
    %v151 = vpop.xlane.xlu0 %150
    %152 = vmax.xlane.f32.xlu0 %v148
    %v153 = vpop.xlane.xlu0 %152
    %154 = vmax.xlane.f32.xlu0 %v147
    %v155 = vpop.xlane.xlu0 %154
    %156 = vmax.xlane.f32.xlu0 %v149
    %v157 = vpop.xlane.xlu0 %156
    %vm158 = vcmask 7168
    %v159 = vsel %vm158, %v151, %v155
    %v160 = vsel %vm158, %v153, %v157
    %162 = vset.pattern.permute.xlu0 16
    %163 = vperm.xlu0 %162, %v57
    %v164 = vpop.permute.xlu0 %163
    %167 = vset.pattern.permute.xlu0 16
    %168 = vperm.xlu0 %167, %v58
    %v169 = vpop.permute.xlu0 %168
    %172 = vset.pattern.permute.xlu0 16
    %173 = vperm.xlu0 %172, %v59
    %v174 = vpop.permute.xlu0 %173
    %177 = vset.pattern.permute.xlu0 16
    %178 = vperm.xlu0 %177, %v60
    %v179 = vpop.permute.xlu0 %178
    %vm181 = vcmask 130048
    %v182 = vsel %vm181, %v57, 0
    %v184 = vsel %vm181, %v58, 0
    %v186 = vsel %vm181, %v59, 0
    %v188 = vsel %vm181, %v60, 0
    %190 = vmatpush.msra.mxu0 0.0
    %191 = vmatpush.msra.mxu0 0.0
    %192 = vmatpush.msra.mxu0 0.0
    %193 = vmatpush.msra.mxu0 0.0
    %194 = vmatpush.msra.mxu0 0.0
    %195 = vmatpush.msra.mxu0 0.0
    %196 = vmatpush.msra.mxu0 0.0
    %197 = vmatpush.msra.mxu0 0.0
    %198 = vmatpush.msra.mxu0 0.0
    %199 = vmatpush.msra.mxu0 0.0
    %200 = vmatpush.msra.mxu0 0.0
    %201 = vmatpush.msra.mxu0 0.0
    %202 = vmatpush.msra.mxu0 0.0
    %203 = vmatpush.msra.mxu0 0.0
    %204 = vmatpush.msra.mxu0 %v160
    %205 = vmatpush.msra.mxu0 %v159
    %206 = vmatmul.f32.gmra.mxu0 %v182
    %v207 = vpop.f32.mrf.mxu0
    %v208 = vadd.f32 %v164, %v207
    %209 = vmatmul.f32.gmra.mxu0 %v184
    %v210 = vpop.f32.mrf.mxu0
    %v211 = vadd.f32 %v169, %v210
    %212 = vmatmul.f32.gmra.mxu0 %v186
    %v213 = vpop.f32.mrf.mxu0
    %v214 = vadd.f32 %v174, %v213
    %215 = vmatmul.f32.gmra.mxu0 %v188
    %v216 = vpop.f32.mrf.mxu0
    %v217 = vadd.f32 %v179, %v216
    %218 = vdwg.mxu0
    %v219 = vmax.f32 %v208, 0.0
    %v220 = vmax.f32 %v211, 0.0
    %v221 = vmax.f32 %v214, 0.0
    %v222 = vmax.f32 %v217, 0.0
    %223 = vset.pattern.permute.xlu0 17
    %224 = vperm.xlu0 %223, %v57
    %v225 = vpop.permute.xlu0 %224
    %227 = vset.pattern.permute.xlu0 17
    %228 = vperm.xlu0 %227, %v58
    %v229 = vpop.permute.xlu0 %228
    %231 = vset.pattern.permute.xlu0 17
    %232 = vperm.xlu0 %231, %v59
    %v233 = vpop.permute.xlu0 %232
    %235 = vset.pattern.permute.xlu0 17
    %236 = vperm.xlu0 %235, %v60
    %v237 = vpop.permute.xlu0 %236
    %v239 = vmul.f32 %v225, %v219
    %v240 = vmul.f32 %v229, %v220
    %v241 = vmul.f32 %v233, %v221
    %v242 = vmul.f32 %v237, %v222
    %vm243 = vcmask 15360
    %v244 = vsel %vm243, %v239, 0.0
    %v245 = vsel %vm243, %v240, 0.0
    %v246 = vadd.f32 %v244, %v245
    %v247 = vsel %vm243, %v241, 0.0
    %v248 = vadd.f32 %v246, %v247
    %v249 = vsel %vm243, %v242, 0.0
    %v250 = vadd.f32 %v248, %v249
    %v251 = vrot.slane %v250, 4
    %v252 = vadd.f32 %v250, %v251
    %v253 = vrot.slane %v252, 2
    %v254 = vadd.f32 %v252, %v253
    %v255 = vrot.slane %v254, 1
    %v256 = vadd.f32 %v254, %v255
    %257 = vset.pattern.permute.xlu0 18
    %258 = vperm.xlu0 %257, %v57
    %v259 = vpop.permute.xlu0 %258
    %v261 = vadd.f32 %v256, %v259
    %v262 = vxor.u32 %v261, 2147483648
    %v263 = vmul.f32 %v262, 1.442695
    %v264 = vpow.pop %v263
    %v265 = vadd.f32 %v264, 1.0
    %v266 = vrcp.pop %v265
    %v267 = vmul.f32 %v265, %v266
    %v268 = vsub.f32 1.0, %v267
    %v269 = vmul.f32 %v266, %v268
    %v270 = vadd.f32 %v266, %v269
    %vm271 = vweird.f32 %v265
    %vm272 = vweird.f32 %v266
    %vm273 = vmor %vm271, %vm272
    %v274 = vsel %vm273, %v266, %v270
    %v275 = vand.u32 2147483647, %v265
    %vm276 = vcmp.eq.f32.partialorder %v275, 8.507059e+37
    %v277 = vand.u32 %v265, 2147483648
    %v278 = vor.u32 1.1754944e-38, %v277
    %v279 = vsel %vm276, %v278, %v274
    %v280 = vmul.f32 1.0, %v279
    %vm281 = vcmask 8192
    %282 = vst.msk [vmem:[#allocation5] sm:$0x1] %vm281, %v280
    // Predicated region
    $region18: #{tpu_custom_call.1} parent=1 // pred_check
      _
    $region19: #{tpu_custom_call.1} parent=1 // pred_check_branch
      %284 = sbr.rel (0) target = $region21
    $region20: #{tpu_custom_call.1} parent=1 // pred_region
      %286 = vsyncadd [#allocation4], 0
      %s288 = sshll.u32 [#allocation5], 4
      %s289 = int_to_ptr.vmem [resolvable:$true] %s288
      %s290 = sshll.u32 %s3, 4
      %s291 = int_to_ptr.hbm [resolvable:$true] %s290
      %293 = dma.vmem_to_hbm [thread:$0]  %s289, 16, %s291, [#allocation4]
    $region21: #{tpu_custom_call.1} parent=1 // pred_fallthru
      _
    // Predicated region
    $region22: #{tpu_custom_call.1} parent=1 // pred_check
      _
    $region23: #{tpu_custom_call.1} parent=1 // pred_check_branch
      %295 = sbr.rel (0) target = $region25
    $region24: #{tpu_custom_call.1} parent=1 // pred_region
      %297 = dma.done [#allocation4], 16
    $region25: #{tpu_custom_call.1} parent=1 // pred_fallthru
      _
    %298 = vsyncpa [#allocation3], 1
    %299 = vsyncpa [#allocation4], 1

</llo_original>
